<compile_context>
chip_gen: v7x
topology: tpu7x:2x2x1
jax: 0.10.0
libtpu: 0.0.40
codegen_flags: <defaults>
</compile_context>

<pallas_src>
import functools

import jax
import jax.numpy as jnp
from jax.experimental import pallas as pl
from jax.experimental.pallas import tpu as pltpu

_W_FEAT = 114        # conv1 kernel / feature width
_NWIN = 3            # conv1 windows per sample (342 = 3 * 114)
_LANE = 128          # padded lane width for the conv1/conv2 activations


def _fused_net_kernel(x_ref, w1_ref, b1_ref, w2_ref, b2_ref,
                      wf1_ref, bf1_ref, wf2_ref, bf2_ref, wf3_ref, bf3_ref,
                      out_ref):
    """One batch tile of the full Net forward, entirely in VMEM/registers.

    x_ref   : (bt, 342) f32       -- raw input rows (no host-side padding)
    w1_ref  : (114, 128) bf16     -- conv1 weight^T, out-channels padded ->128
    b1_ref  : (1, 128) f32        -- conv1 bias (lanes 114..127 zero)
    w2_ref  : (3, 128, 128) bf16  -- conv2 scatter matrices, one per tap k
    b2_ref  : (1, 128) f32        -- conv2 bias packed as lanes 38*o + u
    wf1_ref : (128, 64) f32       -- block-diag( fc1.W^T x3 ), padded
    bf1_ref : (1, 64) f32
    wf2_ref : (64, 32) f32        -- block-diag( fc2.W^T x3 ), padded
    bf2_ref : (1, 32) f32
    wf3_ref : (32, 9) f32         -- block-diag( fc3.W^T x3 ), padded
    bf3_ref : (1, 9) f32
    out_ref : (bt, 9) f32         -- out[n, 3*o + j] = fc3 output (sample n, ch o)
    """
    x = x_ref[...]                                    # (bt, 342) f32
    w1 = w1_ref[...]                                  # (114, 128) bf16
    b1 = b1_ref[...]                                  # (1, 128) f32

    # --- conv1 + tanh (per window) and conv2 accumulation, all on the MXU ----
    # y1_w[n, c] = tanh(conv1(x))[n, c, 0, w]
    # Index algebra (i*114 + 3u + k == 3*(38*i + u) + k) turns the PyTorch
    # .view(-1, 3, 1, 114) + Conv2d(3, 3, (1, 3), stride=3) into
    #     z[n, 38*o + u] = b2[o] + sum_k ( y1_k @ W2mat_k )[n, 38*o + u]
    z = None
    for w in range(_NWIN):
        xw = x[:, _W_FEAT * w:_W_FEAT * (w + 1)].astype(jnp.bfloat16)   # (bt, 114)
        yw = jnp.tanh(jnp.dot(xw, w1, preferred_element_type=jnp.float32) + b1)
        part = jnp.dot(yw.astype(jnp.bfloat16), w2_ref[w],
                       preferred_element_type=jnp.float32)              # (bt, 128)
        z = part if z is None else z + part
    z = jnp.tanh(z + b2_ref[...])                     # (bt, 128), lanes 0..113 live

    # --- fc1 -> fc2 -> fc3 as block-diagonal matmuls (3 channels at once) ----
    h = jnp.tanh(jnp.dot(z, wf1_ref[...], preferred_element_type=jnp.float32)
                 + bf1_ref[...])                      # (bt, 64), lanes 0..59 live
    h = jnp.tanh(jnp.dot(h, wf2_ref[...], preferred_element_type=jnp.float32)
                 + bf2_ref[...])                      # (bt, 32), lanes 0..29 live
    h = jnp.dot(h, wf3_ref[...], preferred_element_type=jnp.float32) + bf3_ref[...]
    out_ref[...] = h.astype(out_ref.dtype)            # (bt, 9)


def _pad2d(m, rows, cols):
    out = jnp.zeros((rows, cols), jnp.float32)
    return out.at[:m.shape[0], :m.shape[1]].set(m.astype(jnp.float32))


@functools.partial(jax.jit, static_argnames=("batch_tile",))
def net_forward(x, params, batch_tile=1024):
    """x: (N, 1, 1, 342) NCHW float32 -> (N*3, 3) float32 (same as PyTorch Net)."""
    w1, b1, w2, b2, wf1, bf1, wf2, bf2, wf3, bf3 = params
    N = x.shape[0]
    x2 = x.reshape(N, _NWIN * _W_FEAT)                # free reshape, no copy

    # Batch tiling: single full block for small N; 8-aligned tiles otherwise.
    if N <= batch_tile:
        bt, Np = N, N
    else:
        bt = max(8, (batch_tile // 8) * 8)
        Np = pl.cdiv(N, bt) * bt
        if Np != N:                                   # pad only the ragged tail
            x2 = jnp.pad(x2, ((0, Np - N), (0, 0)))
    n_tiles = Np // bt

    # ---- trace-time parameter packing (tiny, done once per call) -------------
    # conv1: weight^T with out-channel dim padded 114 -> 128.
    w1p = _pad2d(w1.reshape(_W_FEAT, _W_FEAT).T, _W_FEAT, _LANE).astype(jnp.bfloat16)
    b1p = jnp.zeros((1, _LANE), jnp.float32).at[0, :_W_FEAT].set(b1)

    # conv2: scatter matrices W2mat_k = kron(W2[:, :, k]^T, I_38) padded to 128.
    w2m = w2.reshape(3, 3, 3)                         # [o, i, k]
    eye38 = jnp.eye(38, dtype=jnp.float32)
    w2mats = [_pad2d(jnp.kron(w2m[:, :, k].T, eye38), _LANE, _LANE) for k in range(3)]
    w2scat = jnp.stack(w2mats).astype(jnp.bfloat16)   # (3, 128, 128)
    b2p = jnp.zeros((1, _LANE), jnp.float32).at[0, :_W_FEAT].set(jnp.repeat(b2, 38))

    # fc layers: block-diagonal (3 copies) of W^T, padded to MXU-friendly dims.
    eye3 = jnp.eye(3, dtype=jnp.float32)
    wf1b = _pad2d(jnp.kron(eye3, wf1.T), 128, 64)     # (114, 60) -> (128, 64)
    wf2b = _pad2d(jnp.kron(eye3, wf2.T), 64, 32)      # (60, 30)  -> (64, 32)
    wf3b = _pad2d(jnp.kron(eye3, wf3.T), 32, 9)       # (30, 9)   -> (32, 9)
    bf1b = jnp.zeros((1, 64), jnp.float32).at[0, :60].set(jnp.tile(bf1, 3))
    bf2b = jnp.zeros((1, 32), jnp.float32).at[0, :30].set(jnp.tile(bf2, 3))
    bf3b = jnp.tile(bf3, 3).reshape(1, 9).astype(jnp.float32)

    c2 = lambda i: (0, 0)
    c3 = lambda i: (0, 0, 0)

    out = pl.pallas_call(
        _fused_net_kernel,
        out_shape=jax.ShapeDtypeStruct((Np, 9), jnp.float32),
        grid=(n_tiles,),
        in_specs=[
            pl.BlockSpec((bt, _NWIN * _W_FEAT), lambda i: (i, 0)),  # x batch tile
            pl.BlockSpec((_W_FEAT, _LANE), c2),                     # conv1 weight^T
            pl.BlockSpec((1, _LANE), c2),                           # conv1 bias
            pl.BlockSpec((3, _LANE, _LANE), c3),                    # conv2 scatter mats
            pl.BlockSpec((1, _LANE), c2),                           # conv2 bias (packed)
            pl.BlockSpec((128, 64), c2),                            # fc1 block weight
            pl.BlockSpec((1, 64), c2),                              # fc1 block bias
            pl.BlockSpec((64, 32), c2),                             # fc2 block weight
            pl.BlockSpec((1, 32), c2),                              # fc2 block bias
            pl.BlockSpec((32, 9), c2),                              # fc3 block weight
            pl.BlockSpec((1, 9), c2),                               # fc3 block bias
        ],
        out_specs=pl.BlockSpec((bt, 9), lambda i: (i, 0)),
        compiler_params=pltpu.CompilerParams(
            dimension_semantics=("parallel",),
            vmem_limit_bytes=48 * 1024 * 1024),
    )(x2, w1p, b1p, w2scat, b2p, wf1b, bf1b, wf2b, bf2b, wf3b, bf3b)

    # out[n, 3*o + j] corresponds to torch .view(-1, 3) row n*3 + o, col j.
    return out[:N].reshape(N * 3, 3)


def init_params(key):
    """Deterministic init matching the nn.Module parameter shapes."""
    def uniform(k, shape, fan_in):
        bound = 1.0 / jnp.sqrt(jnp.float32(fan_in))
        return jax.random.uniform(k, shape, jnp.float32, -bound, bound)

    ks = jax.random.split(key, 10)
    w1 = uniform(ks[0], (114, 1, 1, 114), 114)   # conv1 weight
    b1 = uniform(ks[1], (114,), 114)             # conv1 bias
    w2 = uniform(ks[2], (3, 3, 1, 3), 9)         # conv2 weight
    b2 = uniform(ks[3], (3,), 9)                 # conv2 bias
    wf1 = uniform(ks[4], (20, 38), 38)           # fc1
    bf1 = uniform(ks[5], (20,), 38)
    wf2 = uniform(ks[6], (10, 20), 20)           # fc2
    bf2 = uniform(ks[7], (10,), 20)
    wf3 = uniform(ks[8], (3, 10), 10)            # fc3
    bf3 = uniform(ks[9], (3,), 10)
    return (w1, b1, w2, b2, wf1, bf1, wf2, bf2, wf3, bf3)


def reference_forward(x, params):
    """Pure-JAX reference implementing the literal PyTorch forward."""
    w1, b1, w2, b2, wf1, bf1, wf2, bf2, wf3, bf3 = params
    N = x.shape[0]
    xw = x.reshape(N, 3, 114)
    c1 = jnp.einsum("nwk,ck->ncw", xw, w1.reshape(114, 114)) + b1[None, :, None]
    c1 = jnp.tanh(c1)                                  # (N, 114, 3)
    a = c1.reshape(N, 3, 1, 114)                       # torch .view(-1, 3, 1, 114)
    a4 = a.reshape(N, 3, 38, 3)
    c2 = jnp.einsum("niwk,oik->now", a4, w2.reshape(3, 3, 3)) + b2[None, :, None]
    c2 = jnp.tanh(c2)                                  # (N, 3, 38)
    h = c2.reshape(N, 3, 38)                           # torch .view(-1, 3, 38)
    h = jnp.tanh(h @ wf1.T + bf1)
    h = jnp.tanh(h @ wf2.T + bf2)
    h = h @ wf3.T + bf3
    return h.reshape(-1, 3)                            # torch .view(-1, 3)


if __name__ == "__main__":
    key = jax.random.PRNGKey(0)
    pkey, xkey = jax.random.split(key)
    params = init_params(pkey)

    # Small case: single block, grid=(1,).
    N = 2
    x = jax.random.normal(xkey, (N, 1, 1, 342), jnp.float32)
    out = jax.block_until_ready(net_forward(x, params))
    assert out.shape == (N * 3, 3), out.shape
    ref = reference_forward(x, params)
    err = float(jnp.max(jnp.abs(out - ref)))
    assert err < 5e-2, f"max abs error {err}"

    # Larger case exercising the pipelined / 'parallel' batch grid (3 tiles of 8,
    # ragged tail padded on the batch axis only).
    N2 = 20
    x2 = jax.random.normal(jax.random.PRNGKey(1), (N2, 1, 1, 342), jnp.float32)
    out2 = jax.block_until_ready(net_forward(x2, params, batch_tile=8))
    assert out2.shape == (N2 * 3, 3), out2.shape
    ref2 = reference_forward(x2, params)
    err2 = float(jnp.max(jnp.abs(out2 - ref2)))
    assert err2 < 5e-2, f"max abs error {err2}"

    print("KERNEL_OK")
</pallas_src>

<mosaic_0001>
module attributes {stable_mosaic.version = 11 : i64} {
  func.func @_fused_net_kernel(%arg0: i32, %arg1: memref<2x342xf32, #tpu.memory_space<vmem>>, %arg2: memref<114x128xbf16, #tpu.memory_space<vmem>>, %arg3: memref<1x128xf32, #tpu.memory_space<vmem>>, %arg4: memref<3x128x128xbf16, #tpu.memory_space<vmem>>, %arg5: memref<1x128xf32, #tpu.memory_space<vmem>>, %arg6: memref<128x64xf32, #tpu.memory_space<vmem>>, %arg7: memref<1x64xf32, #tpu.memory_space<vmem>>, %arg8: memref<64x32xf32, #tpu.memory_space<vmem>>, %arg9: memref<1x32xf32, #tpu.memory_space<vmem>>, %arg10: memref<32x9xf32, #tpu.memory_space<vmem>>, %arg11: memref<1x9xf32, #tpu.memory_space<vmem>>, %arg12: memref<2x9xf32, #tpu.memory_space<vmem>>) attributes {dimension_semantics = [#tpu.dimension_semantics<parallel>], iteration_bounds = array<i64: 1>, scalar_prefetch = 0 : i64, scratch_operands = 0 : i64, tpu.core_type = #tpu.core_type<tc>, window_params = [{transform_indices = @transform_0, window_bounds = array<i64: 2, 342>}, {pipeline_mode = #tpu.pipeline_mode<synchronous>, transform_indices = @transform_1, window_bounds = array<i64: 114, 128>}, {pipeline_mode = #tpu.pipeline_mode<synchronous>, transform_indices = @transform_2, window_bounds = array<i64: 1, 128>}, {pipeline_mode = #tpu.pipeline_mode<synchronous>, transform_indices = @transform_3, window_bounds = array<i64: 3, 128, 128>}, {pipeline_mode = #tpu.pipeline_mode<synchronous>, transform_indices = @transform_4, window_bounds = array<i64: 1, 128>}, {pipeline_mode = #tpu.pipeline_mode<synchronous>, transform_indices = @transform_5, window_bounds = array<i64: 128, 64>}, {pipeline_mode = #tpu.pipeline_mode<synchronous>, transform_indices = @transform_6, window_bounds = array<i64: 1, 64>}, {pipeline_mode = #tpu.pipeline_mode<synchronous>, transform_indices = @transform_7, window_bounds = array<i64: 64, 32>}, {pipeline_mode = #tpu.pipeline_mode<synchronous>, transform_indices = @transform_8, window_bounds = array<i64: 1, 32>}, {pipeline_mode = #tpu.pipeline_mode<synchronous>, transform_indices = @transform_9, window_bounds = array<i64: 32, 9>}, {pipeline_mode = #tpu.pipeline_mode<synchronous>, transform_indices = @transform_10, window_bounds = array<i64: 1, 9>}, {transform_indices = @transform_11, window_bounds = array<i64: 2, 9>}]} {
    %c0 = arith.constant 0 : index
    %c0_0 = arith.constant 0 : index
    %0 = vector.load %arg1[%c0, %c0_0] : memref<2x342xf32, #tpu.memory_space<vmem>>, vector<2x342xf32>
    %c0_1 = arith.constant 0 : index
    %c0_2 = arith.constant 0 : index
    %1 = vector.load %arg2[%c0_1, %c0_2] : memref<114x128xbf16, #tpu.memory_space<vmem>>, vector<114x128xbf16>
    %c0_3 = arith.constant 0 : index
    %c0_4 = arith.constant 0 : index
    %2 = vector.load %arg3[%c0_3, %c0_4] : memref<1x128xf32, #tpu.memory_space<vmem>>, vector<1x128xf32>
    %3 = vector.extract_strided_slice %0 {offsets = [0, 0], sizes = [2, 114], strides = [1, 1]} : vector<2x342xf32> to vector<2x114xf32>
    %4 = arith.truncf %3 : vector<2x114xf32> to vector<2x114xbf16>
    %cst = arith.constant dense<0.000000e+00> : vector<2x128xf32>
    %5 = tpu.matmul %4, %1, %cst {dimension_numbers = #tpu.dot_dimension_numbers<[1], [0], [0], [1], [0, 0, 1, 1], [], []>} : vector<2x114xbf16>, vector<114x128xbf16>, vector<2x128xf32> -> vector<2x128xf32>
    %6 = vector.broadcast %2 : vector<1x128xf32> to vector<2x128xf32>
    %7 = arith.addf %5, %6 : vector<2x128xf32>
    %8 = math.tanh %7 : vector<2x128xf32>
    %9 = arith.truncf %8 : vector<2x128xf32> to vector<2x128xbf16>
    %c0_5 = arith.constant 0 : index
    %c0_6 = arith.constant 0 : index
    %c0_7 = arith.constant 0 : index
    %10 = vector.load %arg4[%c0_5, %c0_6, %c0_7] : memref<3x128x128xbf16, #tpu.memory_space<vmem>>, vector<1x128x128xbf16>
    %11 = vector.shape_cast %10 : vector<1x128x128xbf16> to vector<128x128xbf16>
    %cst_8 = arith.constant dense<0.000000e+00> : vector<2x128xf32>
    %12 = tpu.matmul %9, %11, %cst_8 {dimension_numbers = #tpu.dot_dimension_numbers<[1], [0], [0], [1], [0, 0, 1, 1], [], []>} : vector<2x128xbf16>, vector<128x128xbf16>, vector<2x128xf32> -> vector<2x128xf32>
    %13 = vector.extract_strided_slice %0 {offsets = [0, 114], sizes = [2, 114], strides = [1, 1]} : vector<2x342xf32> to vector<2x114xf32>
    %14 = arith.truncf %13 : vector<2x114xf32> to vector<2x114xbf16>
    %cst_9 = arith.constant dense<0.000000e+00> : vector<2x128xf32>
    %15 = tpu.matmul %14, %1, %cst_9 {dimension_numbers = #tpu.dot_dimension_numbers<[1], [0], [0], [1], [0, 0, 1, 1], [], []>} : vector<2x114xbf16>, vector<114x128xbf16>, vector<2x128xf32> -> vector<2x128xf32>
    %16 = vector.broadcast %2 : vector<1x128xf32> to vector<2x128xf32>
    %17 = arith.addf %15, %16 : vector<2x128xf32>
    %18 = math.tanh %17 : vector<2x128xf32>
    %19 = arith.truncf %18 : vector<2x128xf32> to vector<2x128xbf16>
    %c1 = arith.constant 1 : index
    %c0_10 = arith.constant 0 : index
    %c0_11 = arith.constant 0 : index
    %20 = vector.load %arg4[%c1, %c0_10, %c0_11] : memref<3x128x128xbf16, #tpu.memory_space<vmem>>, vector<1x128x128xbf16>
    %21 = vector.shape_cast %20 : vector<1x128x128xbf16> to vector<128x128xbf16>
    %cst_12 = arith.constant dense<0.000000e+00> : vector<2x128xf32>
    %22 = tpu.matmul %19, %21, %cst_12 {dimension_numbers = #tpu.dot_dimension_numbers<[1], [0], [0], [1], [0, 0, 1, 1], [], []>} : vector<2x128xbf16>, vector<128x128xbf16>, vector<2x128xf32> -> vector<2x128xf32>
    %23 = arith.addf %12, %22 : vector<2x128xf32>
    %24 = vector.extract_strided_slice %0 {offsets = [0, 228], sizes = [2, 114], strides = [1, 1]} : vector<2x342xf32> to vector<2x114xf32>
    %25 = arith.truncf %24 : vector<2x114xf32> to vector<2x114xbf16>
    %cst_13 = arith.constant dense<0.000000e+00> : vector<2x128xf32>
    %26 = tpu.matmul %25, %1, %cst_13 {dimension_numbers = #tpu.dot_dimension_numbers<[1], [0], [0], [1], [0, 0, 1, 1], [], []>} : vector<2x114xbf16>, vector<114x128xbf16>, vector<2x128xf32> -> vector<2x128xf32>
    %27 = vector.broadcast %2 : vector<1x128xf32> to vector<2x128xf32>
    %28 = arith.addf %26, %27 : vector<2x128xf32>
    %29 = math.tanh %28 : vector<2x128xf32>
    %30 = arith.truncf %29 : vector<2x128xf32> to vector<2x128xbf16>
    %c2 = arith.constant 2 : index
    %c0_14 = arith.constant 0 : index
    %c0_15 = arith.constant 0 : index
    %31 = vector.load %arg4[%c2, %c0_14, %c0_15] : memref<3x128x128xbf16, #tpu.memory_space<vmem>>, vector<1x128x128xbf16>
    %32 = vector.shape_cast %31 : vector<1x128x128xbf16> to vector<128x128xbf16>
    %cst_16 = arith.constant dense<0.000000e+00> : vector<2x128xf32>
    %33 = tpu.matmul %30, %32, %cst_16 {dimension_numbers = #tpu.dot_dimension_numbers<[1], [0], [0], [1], [0, 0, 1, 1], [], []>} : vector<2x128xbf16>, vector<128x128xbf16>, vector<2x128xf32> -> vector<2x128xf32>
    %34 = arith.addf %23, %33 : vector<2x128xf32>
    %c0_17 = arith.constant 0 : index
    %c0_18 = arith.constant 0 : index
    %35 = vector.load %arg5[%c0_17, %c0_18] : memref<1x128xf32, #tpu.memory_space<vmem>>, vector<1x128xf32>
    %36 = vector.broadcast %35 : vector<1x128xf32> to vector<2x128xf32>
    %37 = arith.addf %34, %36 : vector<2x128xf32>
    %38 = math.tanh %37 : vector<2x128xf32>
    %c0_19 = arith.constant 0 : index
    %c0_20 = arith.constant 0 : index
    %39 = vector.load %arg6[%c0_19, %c0_20] : memref<128x64xf32, #tpu.memory_space<vmem>>, vector<128x64xf32>
    %cst_21 = arith.constant dense<0.000000e+00> : vector<2x64xf32>
    %40 = tpu.matmul %38, %39, %cst_21 {dimension_numbers = #tpu.dot_dimension_numbers<[1], [0], [0], [1], [0, 0, 1, 1], [], []>} : vector<2x128xf32>, vector<128x64xf32>, vector<2x64xf32> -> vector<2x64xf32>
    %c0_22 = arith.constant 0 : index
    %c0_23 = arith.constant 0 : index
    %41 = vector.load %arg7[%c0_22, %c0_23] : memref<1x64xf32, #tpu.memory_space<vmem>>, vector<1x64xf32>
    %42 = vector.broadcast %41 : vector<1x64xf32> to vector<2x64xf32>
    %43 = arith.addf %40, %42 : vector<2x64xf32>
    %44 = math.tanh %43 : vector<2x64xf32>
    %c0_24 = arith.constant 0 : index
    %c0_25 = arith.constant 0 : index
    %45 = vector.load %arg8[%c0_24, %c0_25] : memref<64x32xf32, #tpu.memory_space<vmem>>, vector<64x32xf32>
    %cst_26 = arith.constant dense<0.000000e+00> : vector<2x32xf32>
    %46 = tpu.matmul %44, %45, %cst_26 {dimension_numbers = #tpu.dot_dimension_numbers<[1], [0], [0], [1], [0, 0, 1, 1], [], []>} : vector<2x64xf32>, vector<64x32xf32>, vector<2x32xf32> -> vector<2x32xf32>
    %c0_27 = arith.constant 0 : index
    %c0_28 = arith.constant 0 : index
    %47 = vector.load %arg9[%c0_27, %c0_28] : memref<1x32xf32, #tpu.memory_space<vmem>>, vector<1x32xf32>
    %48 = vector.broadcast %47 : vector<1x32xf32> to vector<2x32xf32>
    %49 = arith.addf %46, %48 : vector<2x32xf32>
    %50 = math.tanh %49 : vector<2x32xf32>
    %c0_29 = arith.constant 0 : index
    %c0_30 = arith.constant 0 : index
    %51 = vector.load %arg10[%c0_29, %c0_30] : memref<32x9xf32, #tpu.memory_space<vmem>>, vector<32x9xf32>
    %cst_31 = arith.constant dense<0.000000e+00> : vector<2x9xf32>
    %52 = tpu.matmul %50, %51, %cst_31 {dimension_numbers = #tpu.dot_dimension_numbers<[1], [0], [0], [1], [0, 0, 1, 1], [], []>} : vector<2x32xf32>, vector<32x9xf32>, vector<2x9xf32> -> vector<2x9xf32>
    %c0_32 = arith.constant 0 : index
    %c0_33 = arith.constant 0 : index
    %53 = vector.load %arg11[%c0_32, %c0_33] : memref<1x9xf32, #tpu.memory_space<vmem>>, vector<1x9xf32>
    %54 = vector.broadcast %53 : vector<1x9xf32> to vector<2x9xf32>
    %55 = arith.addf %52, %54 : vector<2x9xf32>
    %c0_34 = arith.constant 0 : index
    %c0_35 = arith.constant 0 : index
    %56 = vector.load %arg12[%c0_34, %c0_35] : memref<2x9xf32, #tpu.memory_space<vmem>>, vector<2x9xf32>
    tpu.vector_store %arg12[%c0_34, %c0_35], %55 {strides = array<i32>} : memref<2x9xf32, #tpu.memory_space<vmem>>, vector<2x9xf32>,
    return
  }
  func.func @transform_0(%arg0: i32) -> (i32, i32) {
    %c0_i32 = arith.constant 0 : i32
    %c0_i32_0 = arith.constant 0 : i32
    return %arg0, %c0_i32 : i32, i32
  }
  func.func @transform_1(%arg0: i32) -> (i32, i32) {
    %c0_i32 = arith.constant 0 : i32
    %c0_i32_0 = arith.constant 0 : i32
    %c0_i32_1 = arith.constant 0 : i32
    return %c0_i32, %c0_i32_0 : i32, i32
  }
  func.func @transform_2(%arg0: i32) -> (i32, i32) {
    %c0_i32 = arith.constant 0 : i32
    %c0_i32_0 = arith.constant 0 : i32
    %c0_i32_1 = arith.constant 0 : i32
    return %c0_i32, %c0_i32_0 : i32, i32
  }
  func.func @transform_3(%arg0: i32) -> (i32, i32, i32) {
    %c0_i32 = arith.constant 0 : i32
    %c0_i32_0 = arith.constant 0 : i32
    %c0_i32_1 = arith.constant 0 : i32
    %c0_i32_2 = arith.constant 0 : i32
    return %c0_i32, %c0_i32_0, %c0_i32_1 : i32, i32, i32
  }
  func.func @transform_4(%arg0: i32) -> (i32, i32) {
    %c0_i32 = arith.constant 0 : i32
    %c0_i32_0 = arith.constant 0 : i32
    %c0_i32_1 = arith.constant 0 : i32
    return %c0_i32, %c0_i32_0 : i32, i32
  }
  func.func @transform_5(%arg0: i32) -> (i32, i32) {
    %c0_i32 = arith.constant 0 : i32
    %c0_i32_0 = arith.constant 0 : i32
    %c0_i32_1 = arith.constant 0 : i32
    return %c0_i32, %c0_i32_0 : i32, i32
  }
  func.func @transform_6(%arg0: i32) -> (i32, i32) {
    %c0_i32 = arith.constant 0 : i32
    %c0_i32_0 = arith.constant 0 : i32
    %c0_i32_1 = arith.constant 0 : i32
    return %c0_i32, %c0_i32_0 : i32, i32
  }
  func.func @transform_7(%arg0: i32) -> (i32, i32) {
    %c0_i32 = arith.constant 0 : i32
    %c0_i32_0 = arith.constant 0 : i32
    %c0_i32_1 = arith.constant 0 : i32
    return %c0_i32, %c0_i32_0 : i32, i32
  }
  func.func @transform_8(%arg0: i32) -> (i32, i32) {
    %c0_i32 = arith.constant 0 : i32
    %c0_i32_0 = arith.constant 0 : i32
    %c0_i32_1 = arith.constant 0 : i32
    return %c0_i32, %c0_i32_0 : i32, i32
  }
  func.func @transform_9(%arg0: i32) -> (i32, i32) {
    %c0_i32 = arith.constant 0 : i32
    %c0_i32_0 = arith.constant 0 : i32
    %c0_i32_1 = arith.constant 0 : i32
    return %c0_i32, %c0_i32_0 : i32, i32
  }
  func.func @transform_10(%arg0: i32) -> (i32, i32) {
    %c0_i32 = arith.constant 0 : i32
    %c0_i32_0 = arith.constant 0 : i32
    %c0_i32_1 = arith.constant 0 : i32
    return %c0_i32, %c0_i32_0 : i32, i32
  }
  func.func @transform_11(%arg0: i32) -> (i32, i32) {
    %c0_i32 = arith.constant 0 : i32
    %c0_i32_0 = arith.constant 0 : i32
    return %arg0, %c0_i32 : i32, i32
  }
}

</mosaic_0001>

<llo_original>
// kernel: tile.28
$region0: #{tile.28}
  #allocation0 [shape = 's32[1]{0}', space=sflag, size = 0x4, scoped, tag = 'scoped memory for tile.28']
  %s0 = inlined_call_operand.vmem [shape: f32[3], index: 0, kind: input, shape index: {}]
  %s1 = inlined_call_operand.vmem [shape: f32[3,3], index: 1, kind: output, shape index: {}]
  // Predicated region
  $region2: #{tile.28} parent=0 // pred_check
    _
  $region3: #{tile.28} parent=0 // pred_check_branch
    %3 = sbr.rel (0) target = $region5
  $region4: #{tile.28} parent=0 // pred_region
    _
  $region5: #{tile.28} parent=0 // pred_fallthru
    _
  %v4 = vld [vmem:[%s0] ss:$0 sm:$0xff]
  %5 = vst [vmem:[%s1] sm:$0xf] %v4

// kernel: tile.29
$region0: #{tile.29}
  %s0 = inlined_call_operand.vmem [shape: f32[3,3], index: 0, kind: input, shape index: {}]
  %s1 = inlined_call_operand.vmem [shape: f32[1,9], index: 1, kind: output, shape index: {}]
  $region1: #{tile.29} parent=0
    #allocation0 [shape = 'u8[4096]{0}', space=vmem, size = 0x1000, scoped, tag = 'scoped mem for output reshape']
    #allocation1 [shape = 'u8[4096]{0}', space=vmem, size = 0x1000, scoped, tag = 'scoped mem for input reshape']
    %s3 = sshllo.u32 0, 4
    %v4 = vld [vmem:[%s0] sm:%s3]
    %5 = vst [vmem:[#allocation1] sm:%s3] %v4
    %v6 = vld [vmem:[#allocation1] sm:$0x1]
    %vm7 = vcmask 23552
    %8 = vst.msk [vmem:[#allocation0] sm:$0x1] %vm7, %v6
    %s9 = scalar_lea.vmem [#allocation1], 2
    %v10 = vld [vmem:[%s9] sm:$0x1]
    %11 = vrot.lane.b32.xlu0 %v10, 6
    %v12 = vpop.permute.xlu0 %11
    %vm13 = vcmask 72752
    %14 = vst.msk [vmem:[#allocation0] sm:$0x1] %vm13, %v12
    %s15 = scalar_lea.vmem [#allocation1], 1
    %v16 = vld [vmem:[%s15] sm:$0x1]
    %17 = vrot.lane.b32.xlu0 %v16, 3
    %v18 = vpop.permute.xlu0 %17
    %vm19 = vcmask 48152
    %20 = vst.msk [vmem:[#allocation0] sm:$0x1] %vm19, %v18
    %s22 = sshllo.u32 0, 1
    %v24 = vld [vmem:[#allocation0] sm:%s22]
    %s25 = sshllo.u32 0, 1
    %26 = vst [vmem:[%s1] sm:%s25] %v24

// kernel: net_forward.1
$region0: #{net_forward.1}
  #allocation0 [shape = 'u32[]', space=smem, size = 0x4, offset = 0x4, fixed_abs, tag = 'smem constant byte address 0x4 - core index']
  #allocation1 [shape = 'u32[144,128]{1,0:T(1,128)}', space=vmem, size = 0x12000, scoped, tag = 'internal scratch']
  %s0 = inlined_call_operand.vmem [shape: f32[2,342], index: 0, kind: input, shape index: {}]
  %s1 = inlined_call_operand.vmem [shape: bf16[114,128], index: 1, kind: input, shape index: {}]
  %s2 = inlined_call_operand.vmem [shape: f32[1,128], index: 2, kind: input, shape index: {}]
  %s3 = inlined_call_operand.vmem [shape: bf16[3,128,128], index: 3, kind: input, shape index: {}]
  %s4 = inlined_call_operand.vmem [shape: f32[1,128], index: 4, kind: input, shape index: {}]
  %s5 = inlined_call_operand.vmem [shape: f32[128,64], index: 5, kind: input, shape index: {}]
  %s6 = inlined_call_operand.vmem [shape: f32[1,64], index: 6, kind: input, shape index: {}]
  %s7 = inlined_call_operand.vmem [shape: f32[64,32], index: 7, kind: input, shape index: {}]
  %s8 = inlined_call_operand.vmem [shape: f32[1,32], index: 8, kind: input, shape index: {}]
  %s9 = inlined_call_operand.vmem [shape: f32[32,9], index: 9, kind: input, shape index: {}]
  %s10 = inlined_call_operand.vmem [shape: f32[1,9], index: 10, kind: input, shape index: {}]
  %s11 = inlined_call_operand.vmem [shape: f32[2,9], index: 11, kind: output, shape index: {}]
  %s12 = sld [smem:[#allocation0]]
  $region54: #{net_forward.1} parent=0
    _
  %s14 = ssub.s32 1, %s12
  %s15 = scalar_select 0, %s14, %s12
  // Predicated region
  $region2: #{net_forward.1} parent=0 // pred_check
    _
  $region3: #{net_forward.1} parent=0 // pred_check_branch
    %17 = sbr.rel (0) target = $region5
  $region4: #{net_forward.1} parent=0 // pred_region
    _
  $region5: #{net_forward.1} parent=0 // pred_fallthru
    _
  // Predicated region
  $region6: #{net_forward.1} parent=0 // pred_check
    _
  $region7: #{net_forward.1} parent=0 // pred_check_branch
    %19 = sbr.rel (0) target = $region9
  $region8: #{net_forward.1} parent=0 // pred_region
    _
  $region9: #{net_forward.1} parent=0 // pred_fallthru
    _
  // Predicated region
  $region10: #{net_forward.1} parent=0 // pred_check
    _
  $region11: #{net_forward.1} parent=0 // pred_check_branch
    %21 = sbr.rel (0) target = $region13
  $region12: #{net_forward.1} parent=0 // pred_region
    _
  $region13: #{net_forward.1} parent=0 // pred_fallthru
    _
  // Predicated region
  $region14: #{net_forward.1} parent=0 // pred_check
    _
  $region15: #{net_forward.1} parent=0 // pred_check_branch
    %23 = sbr.rel (0) target = $region17
  $region16: #{net_forward.1} parent=0 // pred_region
    _
  $region17: #{net_forward.1} parent=0 // pred_fallthru
    _
  // Predicated region
  $region18: #{net_forward.1} parent=0 // pred_check
    _
  $region19: #{net_forward.1} parent=0 // pred_check_branch
    %25 = sbr.rel (0) target = $region21
  $region20: #{net_forward.1} parent=0 // pred_region
    _
  $region21: #{net_forward.1} parent=0 // pred_fallthru
    _
  // Predicated region
  $region22: #{net_forward.1} parent=0 // pred_check
    _
  $region23: #{net_forward.1} parent=0 // pred_check_branch
    %27 = sbr.rel (0) target = $region25
  $region24: #{net_forward.1} parent=0 // pred_region
    _
  $region25: #{net_forward.1} parent=0 // pred_fallthru
    _
  // Predicated region
  $region26: #{net_forward.1} parent=0 // pred_check
    _
  $region27: #{net_forward.1} parent=0 // pred_check_branch
    %29 = sbr.rel (0) target = $region29
  $region28: #{net_forward.1} parent=0 // pred_region
    _
  $region29: #{net_forward.1} parent=0 // pred_fallthru
    _
  // Predicated region
  $region30: #{net_forward.1} parent=0 // pred_check
    _
  $region31: #{net_forward.1} parent=0 // pred_check_branch
    %31 = sbr.rel (0) target = $region33
  $region32: #{net_forward.1} parent=0 // pred_region
    _
  $region33: #{net_forward.1} parent=0 // pred_fallthru
    _
  // Predicated region
  $region34: #{net_forward.1} parent=0 // pred_check
    _
  $region35: #{net_forward.1} parent=0 // pred_check_branch
    %33 = sbr.rel (0) target = $region37
  $region36: #{net_forward.1} parent=0 // pred_region
    _
  $region37: #{net_forward.1} parent=0 // pred_fallthru
    _
  // Predicated region
  $region38: #{net_forward.1} parent=0 // pred_check
    _
  $region39: #{net_forward.1} parent=0 // pred_check_branch
    %35 = sbr.rel (0) target = $region41
  $region40: #{net_forward.1} parent=0 // pred_region
    _
  $region41: #{net_forward.1} parent=0 // pred_fallthru
    _
  // Predicated region
  $region42: #{net_forward.1} parent=0 // pred_check
    _
  $region43: #{net_forward.1} parent=0 // pred_check_branch
    %37 = sbr.rel (0) target = $region45
  $region44: #{net_forward.1} parent=0 // pred_region
    _
  $region45: #{net_forward.1} parent=0 // pred_fallthru
    _
  %v39 = vld [vmem:[%s0] sm:$0x3f]
  %v40 = vld [vmem:[%s1] sm:$0xf]
  %v41 = vld [vmem:[%s1 + $0x4] sm:$0xf]
  %v42 = vld [vmem:[%s1 + $0x8] sm:$0xf]
  %v43 = vld [vmem:[%s1 + $0xc] sm:$0xf]
  %v44 = vld [vmem:[%s1 + $0x10] sm:$0xf]
  %v45 = vld [vmem:[%s1 + $0x14] sm:$0xf]
  %v46 = vld [vmem:[%s1 + $0x18] sm:$0xf]
  %v47 = vld [vmem:[%s1 + $0x1c] sm:$0xf]
  %v48 = vld [vmem:[%s1 + $0x20] sm:$0xf]
  %v49 = vld [vmem:[%s1 + $0x24] sm:$0xf]
  %v50 = vld [vmem:[%s1 + $0x28] sm:$0xf]
  %v51 = vld [vmem:[%s1 + $0x2c] sm:$0xf]
  %v52 = vld [vmem:[%s1 + $0x30] sm:$0xf]
  %v53 = vld [vmem:[%s1 + $0x34] sm:$0xf]
  %v54 = vld [vmem:[%s1 + $0x38] sm:$0x1]
  %v55 = vld [vmem:[%s2] sm:$0x1]
  %v56 = vpack.c.bf16 %v39, %v39
  %v58 = vlaneseq
  %v59 = vshrl.u32 %v58, 7
  %v60 = vsub.s32 0, %v59
  %v61 = vrot.slane %v55, %v60
  %v78 = vunpack.c.l.b16 %v40
  %v79 = vunpack.c.l.b16 %v41
  %v80 = vunpack.c.l.b16 %v42
  %v81 = vunpack.c.l.b16 %v43
  %v82 = vunpack.c.l.b16 %v44
  %v83 = vunpack.c.l.b16 %v45
  %v84 = vunpack.c.l.b16 %v46
  %v85 = vunpack.c.l.b16 %v47
  %v86 = vunpack.c.l.b16 %v48
  %v87 = vunpack.c.l.b16 %v49
  %v88 = vunpack.c.l.b16 %v50
  %v89 = vunpack.c.l.b16 %v51
  %v90 = vunpack.c.l.b16 %v52
  %v91 = vunpack.c.l.b16 %v53
  %v92 = vunpack.c.l.b16 %v54
  %v93 = vpack.c.b16 %v79, %v78
  %v94 = vpack.c.b16 %v81, %v80
  %v95 = vpack.c.b16 %v83, %v82
  %v96 = vpack.c.b16 %v85, %v84
  %v97 = vpack.c.b16 %v87, %v86
  %v98 = vpack.c.b16 %v89, %v88
  %v99 = vpack.c.b16 %v91, %v90
  %v100 = vpack.c.b16 %v92, %v92
  %vm108 = vcmask 932864
  %v110 = vsel %vm108, %v56, 0
  %vm112 = vcmask 1040384
  %v114 = vsel %vm112, %v100, 0
  %116 = vmatprep.subr.bf16.mxu0 0
  %117 = vmatpush1.bf16.msra.mxu0 %v93
  %118 = vmatprep.subr.bf16.mxu0 0
  %119 = vmatpush1.bf16.msra.mxu0 %v94
  %120 = vmatprep.subr.bf16.mxu0 0
  %121 = vmatpush1.bf16.msra.mxu0 %v95
  %122 = vmatprep.subr.bf16.mxu0 0
  %123 = vmatpush1.bf16.msra.mxu0 %v96
  %124 = vmatprep.subr.bf16.mxu0 0
  %125 = vmatpush1.bf16.msra.mxu0 %v97
  %126 = vmatprep.subr.bf16.mxu0 0
  %127 = vmatpush1.bf16.msra.mxu0 %v98
  %128 = vmatprep.subr.bf16.mxu0 0
  %129 = vmatpush1.bf16.msra.mxu0 %v99
  %130 = vmatprep.subr.bf16.mxu0 0
  %131 = vmatpush1.bf16.msra.mxu0 %v114
  %132 = vmatprep.subr.bf16.mxu0 0
  %133 = vmatpush1.bf16.msra.mxu0 0
  %134 = vmatprep.subr.bf16.mxu0 0
  %135 = vmatpush1.bf16.msra.mxu0 0
  %136 = vmatprep.subr.bf16.mxu0 0
  %137 = vmatpush1.bf16.msra.mxu0 0
  %138 = vmatprep.subr.bf16.mxu0 0
  %139 = vmatpush1.bf16.msra.mxu0 0
  %140 = vmatprep.subr.bf16.mxu0 0
  %141 = vmatpush1.bf16.msra.mxu0 0
  %142 = vmatprep.subr.bf16.mxu0 0
  %143 = vmatpush1.bf16.msra.mxu0 0
  %144 = vmatprep.subr.bf16.mxu0 0
  %145 = vmatpush1.bf16.msra.mxu0 0
  %146 = vmatprep.subr.bf16.mxu0 0
  %147 = vmatpush1.bf16.msra.mxu0 0
  %148 = vmatprep.mubr.bf16.mxu0 0
  %149 = vmatmul.mubr.bf16.gmra.mrb[0].mxu0 %v110
  %v150 = vpop.f32.mrb[0].mxu0
  %v151 = vadd.f32 %v61, %v150
  %v152 = vpop.f32.mrb[0].mxu0
  %v153 = vpop.f32.mrb[0].mxu0
  %v154 = vpop.f32.mrb[0].mxu0
  %155 = vdwg.mxu0
  %v156 = vtanh.pop %v151
  %v157 = vpack.c.bf16 %v156, %v156
  %v158 = vld [vmem:[%s3] sm:$0xf]
  %v159 = vld [vmem:[%s3 + $0x4] sm:$0xf]
  %v160 = vld [vmem:[%s3 + $0x8] sm:$0xf]
  %v161 = vld [vmem:[%s3 + $0xc] sm:$0xf]
  %v162 = vld [vmem:[%s3 + $0x10] sm:$0xf]
  %v163 = vld [vmem:[%s3 + $0x14] sm:$0xf]
  %v164 = vld [vmem:[%s3 + $0x18] sm:$0xf]
  %v165 = vld [vmem:[%s3 + $0x1c] sm:$0xf]
  %v166 = vld [vmem:[%s3 + $0x20] sm:$0xf]
  %v167 = vld [vmem:[%s3 + $0x24] sm:$0xf]
  %v168 = vld [vmem:[%s3 + $0x28] sm:$0xf]
  %v169 = vld [vmem:[%s3 + $0x2c] sm:$0xf]
  %v170 = vld [vmem:[%s3 + $0x30] sm:$0xf]
  %v171 = vld [vmem:[%s3 + $0x34] sm:$0xf]
  %v172 = vld [vmem:[%s3 + $0x38] sm:$0xf]
  %v173 = vld [vmem:[%s3 + $0x3c] sm:$0xf]
  %v176 = vunpack.c.l.s4 1983009808
  %v177 = vunpack.c.0.s8 %v176
  %v178 = vlaneseq
  %v179 = vshrl.u32 %v178, 7
  %v180 = vsub.s32 %v177, %v179
  %v181 = vrot.slane %v39, %v180
  %v182 = vcombine.high %v181, %v181
  %v185 = vpack.c.bf16 %v181, %v181
  %v186 = vpack.c.bf16 %v182, %v182
  %189 = vrot.lane.b32.xlu0 %v185, 14
  %v190 = vpop.permute.xlu0 %189
  %191 = vrot.lane.b32.xlu0 %v186, 14
  %v192 = vpop.permute.xlu0 %191
  %vm193 = vcmask 113664
  %v194 = vsel %vm193, %v190, %v192
  %v196 = vsel %vm108, %v194, 0
  %198 = vmatprep.subr.bf16.mxu0 0
  %199 = vmatpush1.bf16.msra.mxu0 %v93
  %200 = vmatprep.subr.bf16.mxu0 0
  %201 = vmatpush1.bf16.msra.mxu0 %v94
  %202 = vmatprep.subr.bf16.mxu0 0
  %203 = vmatpush1.bf16.msra.mxu0 %v95
  %204 = vmatprep.subr.bf16.mxu0 0
  %205 = vmatpush1.bf16.msra.mxu0 %v96
  %206 = vmatprep.subr.bf16.mxu0 0
  %207 = vmatpush1.bf16.msra.mxu0 %v97
  %208 = vmatprep.subr.bf16.mxu0 0
  %209 = vmatpush1.bf16.msra.mxu0 %v98
  %210 = vmatprep.subr.bf16.mxu0 0
  %211 = vmatpush1.bf16.msra.mxu0 %v99
  %212 = vmatprep.subr.bf16.mxu0 0
  %213 = vmatpush1.bf16.msra.mxu0 %v114
  %214 = vmatprep.subr.bf16.mxu0 0
  %215 = vmatpush1.bf16.msra.mxu0 0
  %216 = vmatprep.subr.bf16.mxu0 0
  %217 = vmatpush1.bf16.msra.mxu0 0
  %218 = vmatprep.subr.bf16.mxu0 0
  %219 = vmatpush1.bf16.msra.mxu0 0
  %220 = vmatprep.subr.bf16.mxu0 0
  %221 = vmatpush1.bf16.msra.mxu0 0
  %222 = vmatprep.subr.bf16.mxu0 0
  %223 = vmatpush1.bf16.msra.mxu0 0
  %224 = vmatprep.subr.bf16.mxu0 0
  %225 = vmatpush1.bf16.msra.mxu0 0
  %226 = vmatprep.subr.bf16.mxu0 0
  %227 = vmatpush1.bf16.msra.mxu0 0
  %228 = vmatprep.subr.bf16.mxu0 0
  %229 = vmatpush1.bf16.msra.mxu0 0
  %230 = vmatprep.mubr.bf16.mxu0 0
  %231 = vmatmul.mubr.bf16.gmra.mrb[0].mxu0 %v196
  %v232 = vpop.f32.mrb[0].mxu0
  %v233 = vadd.f32 %v61, %v232
  %v234 = vpop.f32.mrb[0].mxu0
  %v235 = vpop.f32.mrb[0].mxu0
  %v236 = vpop.f32.mrb[0].mxu0
  %237 = vdwg.mxu0
  %v238 = vtanh.pop %v233
  %v239 = vpack.c.bf16 %v238, %v238
  %s240 = scalar_lea.vmem %s3, 64
  %v241 = vld [vmem:[%s240] sm:$0xf]
  %v242 = vld [vmem:[%s240 + $0x4] sm:$0xf]
  %v243 = vld [vmem:[%s240 + $0x8] sm:$0xf]
  %v244 = vld [vmem:[%s240 + $0xc] sm:$0xf]
  %v245 = vld [vmem:[%s240 + $0x10] sm:$0xf]
  %v246 = vld [vmem:[%s240 + $0x14] sm:$0xf]
  %v247 = vld [vmem:[%s240 + $0x18] sm:$0xf]
  %v248 = vld [vmem:[%s240 + $0x1c] sm:$0xf]
  %v249 = vld [vmem:[%s240 + $0x20] sm:$0xf]
  %v250 = vld [vmem:[%s240 + $0x24] sm:$0xf]
  %v251 = vld [vmem:[%s240 + $0x28] sm:$0xf]
  %v252 = vld [vmem:[%s240 + $0x2c] sm:$0xf]
  %v253 = vld [vmem:[%s240 + $0x30] sm:$0xf]
  %v254 = vld [vmem:[%s240 + $0x34] sm:$0xf]
  %v255 = vld [vmem:[%s240 + $0x38] sm:$0xf]
  %v256 = vld [vmem:[%s240 + $0x3c] sm:$0xf]
  %v273 = vunpack.c.l.b16 %v241
  %v274 = vunpack.c.l.b16 %v242
  %v275 = vunpack.c.l.b16 %v243
  %v276 = vunpack.c.l.b16 %v244
  %v277 = vunpack.c.l.b16 %v245
  %v278 = vunpack.c.l.b16 %v246
  %v279 = vunpack.c.l.b16 %v247
  %v280 = vunpack.c.l.b16 %v248
  %v281 = vunpack.c.l.b16 %v249
  %v282 = vunpack.c.l.b16 %v250
  %v283 = vunpack.c.l.b16 %v251
  %v284 = vunpack.c.l.b16 %v252
  %v285 = vunpack.c.l.b16 %v253
  %v286 = vunpack.c.l.b16 %v254
  %v287 = vunpack.c.l.b16 %v255
  %v288 = vunpack.c.l.b16 %v256
  %v289 = vpack.c.b16 %v274, %v273
  %v290 = vpack.c.b16 %v276, %v275
  %v291 = vpack.c.b16 %v278, %v277
  %v292 = vpack.c.b16 %v280, %v279
  %v293 = vpack.c.b16 %v282, %v281
  %v294 = vpack.c.b16 %v284, %v283
  %v295 = vpack.c.b16 %v286, %v285
  %v296 = vpack.c.b16 %v288, %v287
  %305 = vmatprep.subr.bf16.mxu0 0
  %306 = vmatpush1.bf16.msra.mxu0 %v289
  %307 = vmatprep.subr.bf16.mxu0 0
  %308 = vmatpush1.bf16.msra.mxu0 %v290
  %309 = vmatprep.subr.bf16.mxu0 0
  %310 = vmatpush1.bf16.msra.mxu0 %v291
  %311 = vmatprep.subr.bf16.mxu0 0
  %312 = vmatpush1.bf16.msra.mxu0 %v292
  %313 = vmatprep.subr.bf16.mxu0 0
  %314 = vmatpush1.bf16.msra.mxu0 %v293
  %315 = vmatprep.subr.bf16.mxu0 0
  %316 = vmatpush1.bf16.msra.mxu0 %v294
  %317 = vmatprep.subr.bf16.mxu0 0
  %318 = vmatpush1.bf16.msra.mxu0 %v295
  %319 = vmatprep.subr.bf16.mxu0 0
  %320 = vmatpush1.bf16.msra.mxu0 %v296
  %321 = vmatprep.subr.bf16.mxu0 0
  %322 = vmatpush1.bf16.msra.mxu0 0
  %323 = vmatprep.subr.bf16.mxu0 0
  %324 = vmatpush1.bf16.msra.mxu0 0
  %325 = vmatprep.subr.bf16.mxu0 0
  %326 = vmatpush1.bf16.msra.mxu0 0
  %327 = vmatprep.subr.bf16.mxu0 0
  %328 = vmatpush1.bf16.msra.mxu0 0
  %329 = vmatprep.subr.bf16.mxu0 0
  %330 = vmatpush1.bf16.msra.mxu0 0
  %331 = vmatprep.subr.bf16.mxu0 0
  %332 = vmatpush1.bf16.msra.mxu0 0
  %333 = vmatprep.subr.bf16.mxu0 0
  %334 = vmatpush1.bf16.msra.mxu0 0
  %335 = vmatprep.subr.bf16.mxu0 0
  %336 = vmatpush1.bf16.msra.mxu0 0
  %337 = vmatprep.mubr.bf16.mxu0 0
  %338 = vmatmul.mubr.bf16.gmra.mrb[0].mxu0 %v239
  %v339 = vpop.f32.mrb[0].mxu0
  %v340 = vadd.f32 0.0, %v339
  %v341 = vpop.f32.mrb[0].mxu0
  %v342 = vpop.f32.mrb[0].mxu0
  %v343 = vpop.f32.mrb[0].mxu0
  %344 = vdwg.mxu0
  %v361 = vunpack.c.l.b16 %v158
  %v362 = vunpack.c.l.b16 %v159
  %v363 = vunpack.c.l.b16 %v160
  %v364 = vunpack.c.l.b16 %v161
  %v365 = vunpack.c.l.b16 %v162
  %v366 = vunpack.c.l.b16 %v163
  %v367 = vunpack.c.l.b16 %v164
  %v368 = vunpack.c.l.b16 %v165
  %v369 = vunpack.c.l.b16 %v166
  %v370 = vunpack.c.l.b16 %v167
  %v371 = vunpack.c.l.b16 %v168
  %v372 = vunpack.c.l.b16 %v169
  %v373 = vunpack.c.l.b16 %v170
  %v374 = vunpack.c.l.b16 %v171
  %v375 = vunpack.c.l.b16 %v172
  %v376 = vunpack.c.l.b16 %v173
  %v377 = vpack.c.b16 %v362, %v361
  %v378 = vpack.c.b16 %v364, %v363
  %v379 = vpack.c.b16 %v366, %v365
  %v380 = vpack.c.b16 %v368, %v367
  %v381 = vpack.c.b16 %v370, %v369
  %v382 = vpack.c.b16 %v372, %v371
  %v383 = vpack.c.b16 %v374, %v373
  %v384 = vpack.c.b16 %v376, %v375
  %393 = vmatprep.subr.bf16.mxu0 0
  %394 = vmatpush1.bf16.msra.mxu0 %v377
  %395 = vmatprep.subr.bf16.mxu0 0
  %396 = vmatpush1.bf16.msra.mxu0 %v378
  %397 = vmatprep.subr.bf16.mxu0 0
  %398 = vmatpush1.bf16.msra.mxu0 %v379
  %399 = vmatprep.subr.bf16.mxu0 0
  %400 = vmatpush1.bf16.msra.mxu0 %v380
  %401 = vmatprep.subr.bf16.mxu0 0
  %402 = vmatpush1.bf16.msra.mxu0 %v381
  %403 = vmatprep.subr.bf16.mxu0 0
  %404 = vmatpush1.bf16.msra.mxu0 %v382
  %405 = vmatprep.subr.bf16.mxu0 0
  %406 = vmatpush1.bf16.msra.mxu0 %v383
  %407 = vmatprep.subr.bf16.mxu0 0
  %408 = vmatpush1.bf16.msra.mxu0 %v384
  %409 = vmatprep.subr.bf16.mxu0 0
  %410 = vmatpush1.bf16.msra.mxu0 0
  %411 = vmatprep.subr.bf16.mxu0 0
  %412 = vmatpush1.bf16.msra.mxu0 0
  %413 = vmatprep.subr.bf16.mxu0 0
  %414 = vmatpush1.bf16.msra.mxu0 0
  %415 = vmatprep.subr.bf16.mxu0 0
  %416 = vmatpush1.bf16.msra.mxu0 0
  %417 = vmatprep.subr.bf16.mxu0 0
  %418 = vmatpush1.bf16.msra.mxu0 0
  %419 = vmatprep.subr.bf16.mxu0 0
  %420 = vmatpush1.bf16.msra.mxu0 0
  %421 = vmatprep.subr.bf16.mxu0 0
  %422 = vmatpush1.bf16.msra.mxu0 0
  %423 = vmatprep.subr.bf16.mxu0 0
  %424 = vmatpush1.bf16.msra.mxu0 0
  %425 = vmatprep.mubr.bf16.mxu0 0
  %426 = vmatmul.mubr.bf16.gmra.mrb[0].mxu0 %v157
  %v427 = vpop.f32.mrb[0].mxu0
  %v428 = vadd.f32 %v340, %v427
  %v429 = vpop.f32.mrb[0].mxu0
  %v430 = vpop.f32.mrb[0].mxu0
  %v431 = vpop.f32.mrb[0].mxu0
  %432 = vdwg.mxu0
  %v433 = vcombine.high %v39, %v39
  %v435 = vunpack.c.l.s4 1983009808
  %v436 = vunpack.c.0.s8 %v435
  %v437 = vlaneseq
  %v438 = vshrl.u32 %v437, 7
  %v439 = vsub.s32 %v436, %v438
  %v440 = vrot.slane %v433, %v439
  %441 = vrot.lane.b32.xlu0 %v182, 28
  %v442 = vpop.permute.xlu0 %441
  %443 = vrot.lane.b32.xlu0 %v440, 28
  %v444 = vpop.permute.xlu0 %443
  %vm445 = vcmask 228352
  %v446 = vsel %vm445, %v442, %v444
  %v448 = vpack.c.bf16 %v446, %v446
  %v450 = vsel %vm108, %v448, 0
  %452 = vmatprep.subr.bf16.mxu0 0
  %453 = vmatpush1.bf16.msra.mxu0 %v93
  %454 = vmatprep.subr.bf16.mxu0 0
  %455 = vmatpush1.bf16.msra.mxu0 %v94
  %456 = vmatprep.subr.bf16.mxu0 0
  %457 = vmatpush1.bf16.msra.mxu0 %v95
  %458 = vmatprep.subr.bf16.mxu0 0
  %459 = vmatpush1.bf16.msra.mxu0 %v96
  %460 = vmatprep.subr.bf16.mxu0 0
  %461 = vmatpush1.bf16.msra.mxu0 %v97
  %462 = vmatprep.subr.bf16.mxu0 0
  %463 = vmatpush1.bf16.msra.mxu0 %v98
  %464 = vmatprep.subr.bf16.mxu0 0
  %465 = vmatpush1.bf16.msra.mxu0 %v99
  %466 = vmatprep.subr.bf16.mxu0 0
  %467 = vmatpush1.bf16.msra.mxu0 %v114
  %468 = vmatprep.subr.bf16.mxu0 0
  %469 = vmatpush1.bf16.msra.mxu0 0
  %470 = vmatprep.subr.bf16.mxu0 0
  %471 = vmatpush1.bf16.msra.mxu0 0
  %472 = vmatprep.subr.bf16.mxu0 0
  %473 = vmatpush1.bf16.msra.mxu0 0
  %474 = vmatprep.subr.bf16.mxu0 0
  %475 = vmatpush1.bf16.msra.mxu0 0
  %476 = vmatprep.subr.bf16.mxu0 0
  %477 = vmatpush1.bf16.msra.mxu0 0
  %478 = vmatprep.subr.bf16.mxu0 0
  %479 = vmatpush1.bf16.msra.mxu0 0
  %480 = vmatprep.subr.bf16.mxu0 0
  %481 = vmatpush1.bf16.msra.mxu0 0
  %482 = vmatprep.subr.bf16.mxu0 0
  %483 = vmatpush1.bf16.msra.mxu0 0
  %484 = vmatprep.mubr.bf16.mxu0 0
  %485 = vmatmul.mubr.bf16.gmra.mrb[0].mxu0 %v450
  %v486 = vpop.f32.mrb[0].mxu0
  %v487 = vadd.f32 %v61, %v486
  %v488 = vpop.f32.mrb[0].mxu0
  %v489 = vpop.f32.mrb[0].mxu0
  %v490 = vpop.f32.mrb[0].mxu0
  %491 = vdwg.mxu0
  %v492 = vtanh.pop %v487
  %v493 = vpack.c.bf16 %v492, %v492
  %s494 = scalar_lea.vmem %s3, 128
  %v495 = vld [vmem:[%s494] sm:$0xf]
  %v496 = vld [vmem:[%s494 + $0x4] sm:$0xf]
  %v497 = vld [vmem:[%s494 + $0x8] sm:$0xf]
  %v498 = vld [vmem:[%s494 + $0xc] sm:$0xf]
  %v499 = vld [vmem:[%s494 + $0x10] sm:$0xf]
  %v500 = vld [vmem:[%s494 + $0x14] sm:$0xf]
  %v501 = vld [vmem:[%s494 + $0x18] sm:$0xf]
  %v502 = vld [vmem:[%s494 + $0x1c] sm:$0xf]
  %v503 = vld [vmem:[%s494 + $0x20] sm:$0xf]
  %v504 = vld [vmem:[%s494 + $0x24] sm:$0xf]
  %v505 = vld [vmem:[%s494 + $0x28] sm:$0xf]
  %v506 = vld [vmem:[%s494 + $0x2c] sm:$0xf]
  %v507 = vld [vmem:[%s494 + $0x30] sm:$0xf]
  %v508 = vld [vmem:[%s494 + $0x34] sm:$0xf]
  %v509 = vld [vmem:[%s494 + $0x38] sm:$0xf]
  %v510 = vld [vmem:[%s494 + $0x3c] sm:$0xf]
  %v527 = vunpack.c.l.b16 %v495
  %v528 = vunpack.c.l.b16 %v496
  %v529 = vunpack.c.l.b16 %v497
  %v530 = vunpack.c.l.b16 %v498
  %v531 = vunpack.c.l.b16 %v499
  %v532 = vunpack.c.l.b16 %v500
  %v533 = vunpack.c.l.b16 %v501
  %v534 = vunpack.c.l.b16 %v502
  %v535 = vunpack.c.l.b16 %v503
  %v536 = vunpack.c.l.b16 %v504
  %v537 = vunpack.c.l.b16 %v505
  %v538 = vunpack.c.l.b16 %v506
  %v539 = vunpack.c.l.b16 %v507
  %v540 = vunpack.c.l.b16 %v508
  %v541 = vunpack.c.l.b16 %v509
  %v542 = vunpack.c.l.b16 %v510
  %v543 = vpack.c.b16 %v528, %v527
  %v544 = vpack.c.b16 %v530, %v529
  %v545 = vpack.c.b16 %v532, %v531
  %v546 = vpack.c.b16 %v534, %v533
  %v547 = vpack.c.b16 %v536, %v535
  %v548 = vpack.c.b16 %v538, %v537
  %v549 = vpack.c.b16 %v540, %v539
  %v550 = vpack.c.b16 %v542, %v541
  %559 = vmatprep.subr.bf16.mxu0 0
  %560 = vmatpush1.bf16.msra.mxu0 %v543
  %561 = vmatprep.subr.bf16.mxu0 0
  %562 = vmatpush1.bf16.msra.mxu0 %v544
  %563 = vmatprep.subr.bf16.mxu0 0
  %564 = vmatpush1.bf16.msra.mxu0 %v545
  %565 = vmatprep.subr.bf16.mxu0 0
  %566 = vmatpush1.bf16.msra.mxu0 %v546
  %567 = vmatprep.subr.bf16.mxu0 0
  %568 = vmatpush1.bf16.msra.mxu0 %v547
  %569 = vmatprep.subr.bf16.mxu0 0
  %570 = vmatpush1.bf16.msra.mxu0 %v548
  %571 = vmatprep.subr.bf16.mxu0 0
  %572 = vmatpush1.bf16.msra.mxu0 %v549
  %573 = vmatprep.subr.bf16.mxu0 0
  %574 = vmatpush1.bf16.msra.mxu0 %v550
  %575 = vmatprep.subr.bf16.mxu0 0
  %576 = vmatpush1.bf16.msra.mxu0 0
  %577 = vmatprep.subr.bf16.mxu0 0
  %578 = vmatpush1.bf16.msra.mxu0 0
  %579 = vmatprep.subr.bf16.mxu0 0
  %580 = vmatpush1.bf16.msra.mxu0 0
  %581 = vmatprep.subr.bf16.mxu0 0
  %582 = vmatpush1.bf16.msra.mxu0 0
  %583 = vmatprep.subr.bf16.mxu0 0
  %584 = vmatpush1.bf16.msra.mxu0 0
  %585 = vmatprep.subr.bf16.mxu0 0
  %586 = vmatpush1.bf16.msra.mxu0 0
  %587 = vmatprep.subr.bf16.mxu0 0
  %588 = vmatpush1.bf16.msra.mxu0 0
  %589 = vmatprep.subr.bf16.mxu0 0
  %590 = vmatpush1.bf16.msra.mxu0 0
  %591 = vmatprep.mubr.bf16.mxu0 0
  %592 = vmatmul.mubr.bf16.gmra.mrb[0].mxu0 %v493
  %v593 = vpop.f32.mrb[0].mxu0
  %v594 = vadd.f32 0.0, %v593
  %v595 = vpop.f32.mrb[0].mxu0
  %v596 = vpop.f32.mrb[0].mxu0
  %v597 = vpop.f32.mrb[0].mxu0
  %598 = vdwg.mxu0
  %v599 = vadd.f32 %v428, %v594
  %v600 = vld [vmem:[%s4] sm:$0x1]
  %v602 = vlaneseq
  %v603 = vshrl.u32 %v602, 7
  %v604 = vsub.s32 0, %v603
  %v605 = vrot.slane %v600, %v604
  %v607 = vadd.f32 %v599, %v605
  %v608 = vtanh.pop %v607
  %v609 = vld [vmem:[%s5] sm:$0xff]
  %v610 = vld [vmem:[%s5 + $0x8] sm:$0xff]
  %v611 = vld [vmem:[%s5 + $0x10] sm:$0xff]
  %v612 = vld [vmem:[%s5 + $0x18] sm:$0xff]
  %v613 = vld [vmem:[%s5 + $0x20] sm:$0xff]
  %v614 = vld [vmem:[%s5 + $0x28] sm:$0xff]
  %v615 = vld [vmem:[%s5 + $0x30] sm:$0xff]
  %v616 = vld [vmem:[%s5 + $0x38] sm:$0xff]
  %v617 = vld [vmem:[%s5 + $0x40] sm:$0xff]
  %v618 = vld [vmem:[%s5 + $0x48] sm:$0xff]
  %v619 = vld [vmem:[%s5 + $0x50] sm:$0xff]
  %v620 = vld [vmem:[%s5 + $0x58] sm:$0xff]
  %v621 = vld [vmem:[%s5 + $0x60] sm:$0xff]
  %v622 = vld [vmem:[%s5 + $0x68] sm:$0xff]
  %v623 = vld [vmem:[%s5 + $0x70] sm:$0xff]
  %v624 = vld [vmem:[%s5 + $0x78] sm:$0xff]
  %v625 = vld [vmem:[%s6] sm:$0x1]
  %v627 = vlaneseq
  %v628 = vshrl.u32 %v627, 7
  %v629 = vsub.s32 0, %v628
  %v630 = vrot.slane %v625, %v629
  %632 = vmatprep.subr.mxu0 0.0
  %633 = vmatpush1.msra.mxu0 %v609
  %634 = vmatprep.subr.mxu0 0.0
  %635 = vmatpush1.msra.mxu0 %v610
  %636 = vmatprep.subr.mxu0 0.0
  %637 = vmatpush1.msra.mxu0 %v611
  %638 = vmatprep.subr.mxu0 0.0
  %639 = vmatpush1.msra.mxu0 %v612
  %640 = vmatprep.subr.mxu0 0.0
  %641 = vmatpush1.msra.mxu0 %v613
  %642 = vmatprep.subr.mxu0 0.0
  %643 = vmatpush1.msra.mxu0 %v614
  %644 = vmatprep.subr.mxu0 0.0
  %645 = vmatpush1.msra.mxu0 %v615
  %646 = vmatprep.subr.mxu0 0.0
  %647 = vmatpush1.msra.mxu0 %v616
  %648 = vmatprep.subr.mxu0 0.0
  %649 = vmatpush1.msra.mxu0 %v617
  %650 = vmatprep.subr.mxu0 0.0
  %651 = vmatpush1.msra.mxu0 %v618
  %652 = vmatprep.subr.mxu0 0.0
  %653 = vmatpush1.msra.mxu0 %v619
  %654 = vmatprep.subr.mxu0 0.0
  %655 = vmatpush1.msra.mxu0 %v620
  %656 = vmatprep.subr.mxu0 0.0
  %657 = vmatpush1.msra.mxu0 %v621
  %658 = vmatprep.subr.mxu0 0.0
  %659 = vmatpush1.msra.mxu0 %v622
  %660 = vmatprep.subr.mxu0 0.0
  %661 = vmatpush1.msra.mxu0 %v623
  %662 = vmatprep.subr.mxu0 0.0
  %663 = vmatpush1.msra.mxu0 %v624
  %664 = vmatprep.subr.mxu0 0.0
  %665 = vmatpush1.msra.mxu0 0.0
  %666 = vmatprep.subr.mxu0 0.0
  %667 = vmatpush1.msra.mxu0 0.0
  %668 = vmatprep.subr.mxu0 0.0
  %669 = vmatpush1.msra.mxu0 0.0
  %670 = vmatprep.subr.mxu0 0.0
  %671 = vmatpush1.msra.mxu0 0.0
  %672 = vmatprep.subr.mxu0 0.0
  %673 = vmatpush1.msra.mxu0 0.0
  %674 = vmatprep.subr.mxu0 0.0
  %675 = vmatpush1.msra.mxu0 0.0
  %676 = vmatprep.subr.mxu0 0.0
  %677 = vmatpush1.msra.mxu0 0.0
  %678 = vmatprep.subr.mxu0 0.0
  %679 = vmatpush1.msra.mxu0 0.0
  %680 = vmatprep.subr.mxu0 0.0
  %681 = vmatpush1.msra.mxu0 0.0
  %682 = vmatprep.subr.mxu0 0.0
  %683 = vmatpush1.msra.mxu0 0.0
  %684 = vmatprep.subr.mxu0 0.0
  %685 = vmatpush1.msra.mxu0 0.0
  %686 = vmatprep.subr.mxu0 0.0
  %687 = vmatpush1.msra.mxu0 0.0
  %688 = vmatprep.subr.mxu0 0.0
  %689 = vmatpush1.msra.mxu0 0.0
  %690 = vmatprep.subr.mxu0 0.0
  %691 = vmatpush1.msra.mxu0 0.0
  %692 = vmatprep.subr.mxu0 0.0
  %693 = vmatpush1.msra.mxu0 0.0
  %694 = vmatprep.subr.mxu0 0.0
  %695 = vmatpush1.msra.mxu0 0.0
  %696 = vmatprep.mubr.f32.mxu0 0.0
  %697 = vmatmul.mubr.f32.gmra.mrb[0].mxu0 %v608
  %v698 = vpop.f32.mrb[0].mxu0
  %v699 = vadd.f32 %v630, %v698
  %v700 = vpop.f32.mrb[0].mxu0
  %701 = vdwg.mxu0
  %v702 = vtanh.pop %v699
  %v703 = vld [vmem:[%s7] sm:$0xff]
  %v704 = vld [vmem:[%s7 + $0x8] sm:$0xff]
  %v705 = vld [vmem:[%s7 + $0x10] sm:$0xff]
  %v706 = vld [vmem:[%s7 + $0x18] sm:$0xff]
  %v707 = vld [vmem:[%s7 + $0x20] sm:$0xff]
  %v708 = vld [vmem:[%s7 + $0x28] sm:$0xff]
  %v709 = vld [vmem:[%s7 + $0x30] sm:$0xff]
  %v710 = vld [vmem:[%s7 + $0x38] sm:$0xff]
  %v711 = vld [vmem:[%s8] sm:$0x1]
  %v713 = vlaneseq
  %v714 = vshrl.u32 %v713, 7
  %v715 = vsub.s32 0, %v714
  %v716 = vrot.slane %v711, %v715
  %vm718 = vcmask 523264
  %v720 = vsel %vm718, %v702, 0
  %722 = vmatprep.subr.mxu0 0.0
  %723 = vmatpush1.msra.mxu0 %v703
  %724 = vmatprep.subr.mxu0 0.0
  %725 = vmatpush1.msra.mxu0 %v704
  %726 = vmatprep.subr.mxu0 0.0
  %727 = vmatpush1.msra.mxu0 %v705
  %728 = vmatprep.subr.mxu0 0.0
  %729 = vmatpush1.msra.mxu0 %v706
  %730 = vmatprep.subr.mxu0 0.0
  %731 = vmatpush1.msra.mxu0 %v707
  %732 = vmatprep.subr.mxu0 0.0
  %733 = vmatpush1.msra.mxu0 %v708
  %734 = vmatprep.subr.mxu0 0.0
  %735 = vmatpush1.msra.mxu0 %v709
  %736 = vmatprep.subr.mxu0 0.0
  %737 = vmatpush1.msra.mxu0 %v710
  %738 = vmatprep.subr.mxu0 0.0
  %739 = vmatpush1.msra.mxu0 0.0
  %740 = vmatprep.subr.mxu0 0.0
  %741 = vmatpush1.msra.mxu0 0.0
  %742 = vmatprep.subr.mxu0 0.0
  %743 = vmatpush1.msra.mxu0 0.0
  %744 = vmatprep.subr.mxu0 0.0
  %745 = vmatpush1.msra.mxu0 0.0
  %746 = vmatprep.subr.mxu0 0.0
  %747 = vmatpush1.msra.mxu0 0.0
  %748 = vmatprep.subr.mxu0 0.0
  %749 = vmatpush1.msra.mxu0 0.0
  %750 = vmatprep.subr.mxu0 0.0
  %751 = vmatpush1.msra.mxu0 0.0
  %752 = vmatprep.subr.mxu0 0.0
  %753 = vmatpush1.msra.mxu0 0.0
  %754 = vmatprep.subr.mxu0 0.0
  %755 = vmatpush1.msra.mxu0 0.0
  %756 = vmatprep.subr.mxu0 0.0
  %757 = vmatpush1.msra.mxu0 0.0
  %758 = vmatprep.subr.mxu0 0.0
  %759 = vmatpush1.msra.mxu0 0.0
  %760 = vmatprep.subr.mxu0 0.0
  %761 = vmatpush1.msra.mxu0 0.0
  %762 = vmatprep.subr.mxu0 0.0
  %763 = vmatpush1.msra.mxu0 0.0
  %764 = vmatprep.subr.mxu0 0.0
  %765 = vmatpush1.msra.mxu0 0.0
  %766 = vmatprep.subr.mxu0 0.0
  %767 = vmatpush1.msra.mxu0 0.0
  %768 = vmatprep.subr.mxu0 0.0
  %769 = vmatpush1.msra.mxu0 0.0
  %770 = vmatprep.subr.mxu0 0.0
  %771 = vmatpush1.msra.mxu0 0.0
  %772 = vmatprep.subr.mxu0 0.0
  %773 = vmatpush1.msra.mxu0 0.0
  %774 = vmatprep.subr.mxu0 0.0
  %775 = vmatpush1.msra.mxu0 0.0
  %776 = vmatprep.subr.mxu0 0.0
  %777 = vmatpush1.msra.mxu0 0.0
  %778 = vmatprep.subr.mxu0 0.0
  %779 = vmatpush1.msra.mxu0 0.0
  %780 = vmatprep.subr.mxu0 0.0
  %781 = vmatpush1.msra.mxu0 0.0
  %782 = vmatprep.subr.mxu0 0.0
  %783 = vmatpush1.msra.mxu0 0.0
  %784 = vmatprep.subr.mxu0 0.0
  %785 = vmatpush1.msra.mxu0 0.0
  %786 = vmatprep.mubr.f32.mxu0 0.0
  %787 = vmatmul.mubr.f32.gmra.mrb[0].mxu0 %v720
  %v788 = vpop.f32.mrb[0].mxu0
  %v789 = vadd.f32 %v716, %v788
  %v790 = vpop.f32.mrb[0].mxu0
  %791 = vdwg.mxu0
  %v792 = vtanh.pop %v789
  %v793 = vld [vmem:[%s9] sm:$0xff]
  %v794 = vld [vmem:[%s9 + $0x8] sm:$0xff]
  %v795 = vld [vmem:[%s9 + $0x10] sm:$0xff]
  %v796 = vld [vmem:[%s9 + $0x18] sm:$0xff]
  %v797 = vld [vmem:[%s10] sm:$0x1]
  %v799 = vlaneseq
  %v800 = vshrl.u32 %v799, 7
  %v801 = vsub.s32 0, %v800
  %v802 = vrot.slane %v797, %v801
  %vm804 = vcmask 261120
  %v806 = vsel %vm804, %v792, 0
  %808 = vmatprep.subr.mxu0 0.0
  %809 = vmatpush1.msra.mxu0 %v793
  %810 = vmatprep.subr.mxu0 0.0
  %811 = vmatpush1.msra.mxu0 %v794
  %812 = vmatprep.subr.mxu0 0.0
  %813 = vmatpush1.msra.mxu0 %v795
  %814 = vmatprep.subr.mxu0 0.0
  %815 = vmatpush1.msra.mxu0 %v796
  %816 = vmatprep.subr.mxu0 0.0
  %817 = vmatpush1.msra.mxu0 0.0
  %818 = vmatprep.subr.mxu0 0.0
  %819 = vmatpush1.msra.mxu0 0.0
  %820 = vmatprep.subr.mxu0 0.0
  %821 = vmatpush1.msra.mxu0 0.0
  %822 = vmatprep.subr.mxu0 0.0
  %823 = vmatpush1.msra.mxu0 0.0
  %824 = vmatprep.subr.mxu0 0.0
  %825 = vmatpush1.msra.mxu0 0.0
  %826 = vmatprep.subr.mxu0 0.0
  %827 = vmatpush1.msra.mxu0 0.0
  %828 = vmatprep.subr.mxu0 0.0
  %829 = vmatpush1.msra.mxu0 0.0
  %830 = vmatprep.subr.mxu0 0.0
  %831 = vmatpush1.msra.mxu0 0.0
  %832 = vmatprep.subr.mxu0 0.0
  %833 = vmatpush1.msra.mxu0 0.0
  %834 = vmatprep.subr.mxu0 0.0
  %835 = vmatpush1.msra.mxu0 0.0
  %836 = vmatprep.subr.mxu0 0.0
  %837 = vmatpush1.msra.mxu0 0.0
  %838 = vmatprep.subr.mxu0 0.0
  %839 = vmatpush1.msra.mxu0 0.0
  %840 = vmatprep.subr.mxu0 0.0
  %841 = vmatpush1.msra.mxu0 0.0
  %842 = vmatprep.subr.mxu0 0.0
  %843 = vmatpush1.msra.mxu0 0.0
  %844 = vmatprep.subr.mxu0 0.0
  %845 = vmatpush1.msra.mxu0 0.0
  %846 = vmatprep.subr.mxu0 0.0
  %847 = vmatpush1.msra.mxu0 0.0
  %848 = vmatprep.subr.mxu0 0.0
  %849 = vmatpush1.msra.mxu0 0.0
  %850 = vmatprep.subr.mxu0 0.0
  %851 = vmatpush1.msra.mxu0 0.0
  %852 = vmatprep.subr.mxu0 0.0
  %853 = vmatpush1.msra.mxu0 0.0
  %854 = vmatprep.subr.mxu0 0.0
  %855 = vmatpush1.msra.mxu0 0.0
  %856 = vmatprep.subr.mxu0 0.0
  %857 = vmatpush1.msra.mxu0 0.0
  %858 = vmatprep.subr.mxu0 0.0
  %859 = vmatpush1.msra.mxu0 0.0
  %860 = vmatprep.subr.mxu0 0.0
  %861 = vmatpush1.msra.mxu0 0.0
  %862 = vmatprep.subr.mxu0 0.0
  %863 = vmatpush1.msra.mxu0 0.0
  %864 = vmatprep.subr.mxu0 0.0
  %865 = vmatpush1.msra.mxu0 0.0
  %866 = vmatprep.subr.mxu0 0.0
  %867 = vmatpush1.msra.mxu0 0.0
  %868 = vmatprep.subr.mxu0 0.0
  %869 = vmatpush1.msra.mxu0 0.0
  %870 = vmatprep.subr.mxu0 0.0
  %871 = vmatpush1.msra.mxu0 0.0
  %872 = vmatprep.mubr.f32.mxu0 0.0
  %873 = vmatmul.mubr.f32.gmra.mrb[0].mxu0 %v806
  %v874 = vpop.f32.mrb[0].mxu0
  %v875 = vadd.f32 %v802, %v874
  %v876 = vpop.f32.mrb[0].mxu0
  %877 = vdwg.mxu0
  %vm878 = vcmask 66560
  %879 = vst.msk [vmem:[%s11] sm:$0x3] %vm878, %v875
  // Predicated region
  $region46: #{net_forward.1} parent=0 // pred_check
    _
  $region47: #{net_forward.1} parent=0 // pred_check_branch
    %881 = sbr.rel (0) target = $region49
  $region48: #{net_forward.1} parent=0 // pred_region
    _
  $region49: #{net_forward.1} parent=0 // pred_fallthru
    _
  // Predicated region
  $region50: #{net_forward.1} parent=0 // pred_check
    _
  $region51: #{net_forward.1} parent=0 // pred_check_branch
    %883 = sbr.rel (0) target = $region53
  $region52: #{net_forward.1} parent=0 // pred_region
    _
  $region53: #{net_forward.1} parent=0 // pred_fallthru
    _

</llo_original>
